<compile_context>
chip_gen: v7x
topology: tpu7x:2x2x1
jax: 0.10.0
libtpu: 0.0.40
codegen_flags: <defaults>
</compile_context>

<pallas_src>
import jax
import jax.numpy as jnp
from jax import lax
from jax.experimental import pallas as pl
from jax.experimental.pallas import tpu as pltpu


_LAYER_DIMS = (256, 128, 64, 32, 1)
_BN_EPS = 1e-5
_TB_TARGET = 4096          # per-step batch tile target (fits default scoped VMEM)
_SPLIT_THRESHOLD = 1024    # force >=2 grid steps above this batch (v7x megacore)


def _round_up(n, m):
    return (n + m - 1) // m * m


def _mlp_kernel(
    x_ref,
    w1_ref, b1_ref,
    w2_ref, b2_ref,
    w3_ref, b3_ref,
    w4_ref, b4_ref,
    w5t_ref, b5_ref,
    o_ref,
):
    """One batch tile: x [TB, F] (f32) -> lane-dense output [1, TB] (f32)."""
    # Cast to bf16 inside the kernel (no wrapper-side cast/copy pass of x).
    h = x_ref[...].astype(jnp.bfloat16)  # [TB, F]

    # Layers 1-4: Linear -> ReLU.  BN (layers 1-3) is pre-folded into W/b.
    # Dropout = identity (eval mode).
    # Epilogue: bias-add in f32, cast to bf16, ReLU in bf16 (identical result,
    # half the vreg traffic on bf16-capable VALUs).
    for w_ref, b_ref in ((w1_ref, b1_ref), (w2_ref, b2_ref),
                         (w3_ref, b3_ref), (w4_ref, b4_ref)):
        h = jnp.dot(h, w_ref[...], preferred_element_type=jnp.float32) + b_ref[...]
        h = jnp.maximum(h.astype(jnp.bfloat16), jnp.bfloat16(0.0))

    # Layer 5: [1,32] contracted with [TB,32] on dim 1 -> [1, TB] (lane-dense).
    o = lax.dot_general(
        w5t_ref[...], h,
        dimension_numbers=(((1,), (1,)), ((), ())),
        preferred_element_type=jnp.float32,
    )
    o_ref[...] = o + b5_ref[...]


def _choose_tiling(B):
    """Adaptive batch tile: big enough to amortize step overhead, bounded
    padding waste, and >=2 grid steps for moderate/large B (v7x megacore)."""
    num_tiles = max(1, -(-B // _TB_TARGET))          # cdiv
    if num_tiles == 1 and B >= _SPLIT_THRESHOLD:
        num_tiles = 2
    per_tile = -(-B // num_tiles)                    # cdiv
    if num_tiles > 1:
        # Block is a strict sub-window -> last dim of the [1, TB] output block
        # must be a multiple of 128 (also covers sublane alignment of x).
        tb = _round_up(per_tile, 128)
    else:
        # Single tile == full extent; 16 keeps bf16 sublane packing clean.
        tb = _round_up(per_tile, 16)
    return tb, num_tiles


def mlp_forward(x, folded):
    """x: [B, input_size] float32 -> [B, 1] float32 (eval-mode forward)."""
    B, F = x.shape
    TB, num_tiles = _choose_tiling(B)
    B_pad = TB * num_tiles

    # Pad only the tail tile (no-op copy avoided when B is already aligned).
    if B_pad != B:
        x_in = jnp.pad(x, ((0, B_pad - B), (0, 0)))
    else:
        x_in = x

    weights = (
        folded["w1"], folded["b1"],
        folded["w2"], folded["b2"],
        folded["w3"], folded["b3"],
        folded["w4"], folded["b4"],
        folded["w5t"], folded["b5"],
    )

    def const_spec(a):
        # Full-shape block, same block index every grid step -> VMEM-resident.
        return pl.BlockSpec(a.shape, lambda i: (0, 0))

    macs = F * 256 + 256 * 128 + 128 * 64 + 64 * 32 + 32 * 1
    bytes_accessed = (
        B_pad * F * 4            # x in (f32)
        + B_pad * 4              # out (f32)
        + sum(int(a.size) * a.dtype.itemsize for a in weights)
    )

    out = pl.pallas_call(
        _mlp_kernel,
        out_shape=jax.ShapeDtypeStruct((1, B_pad), jnp.float32),
        grid=(num_tiles,),
        in_specs=[pl.BlockSpec((TB, F), lambda i: (i, 0))]
        + [const_spec(a) for a in weights],
        out_specs=pl.BlockSpec((1, TB), lambda i: (0, i)),
        compiler_params=pltpu.CompilerParams(
            dimension_semantics=("parallel",)),
        cost_estimate=pl.CostEstimate(
            flops=2 * B_pad * macs,
            transcendentals=0,
            bytes_accessed=bytes_accessed),
    )(x_in, *weights)

    return out[0, :B][:, None]


def make_params(key, input_size):
    """Torch-default Linear init + non-trivial eval-mode BatchNorm statistics."""
    dims_in = (input_size, 256, 128, 64, 32)
    keys = jax.random.split(key, 22)
    ki = 0
    p = {}
    for i, (fi, fo) in enumerate(zip(dims_in, _LAYER_DIMS), start=1):
        bound = 1.0 / float(fi) ** 0.5
        p[f"w{i}"] = jax.random.uniform(keys[ki], (fi, fo), jnp.float32, -bound, bound); ki += 1
        p[f"b{i}"] = jax.random.uniform(keys[ki], (1, fo), jnp.float32, -bound, bound); ki += 1
    for j, d in zip((1, 2, 3), (256, 128, 64)):
        p[f"gamma{j}"] = jax.random.uniform(keys[ki], (1, d), jnp.float32, 0.5, 1.5); ki += 1
        p[f"beta{j}"] = 0.1 * jax.random.normal(keys[ki], (1, d), jnp.float32); ki += 1
        p[f"mean{j}"] = 0.1 * jax.random.normal(keys[ki], (1, d), jnp.float32); ki += 1
        p[f"var{j}"] = jax.random.uniform(keys[ki], (1, d), jnp.float32, 0.5, 1.5); ki += 1
    return p


def fold_params(p):
    """Fold eval-mode BatchNorm into the preceding Linear; cast weights to bf16."""
    f = {}
    for i in (1, 2, 3):
        s = p[f"gamma{i}"] / jnp.sqrt(p[f"var{i}"] + _BN_EPS)          # [1, d]
        f[f"w{i}"] = (p[f"w{i}"] * s).astype(jnp.bfloat16)             # column scale
        f[f"b{i}"] = (p[f"b{i}"] - p[f"mean{i}"]) * s + p[f"beta{i}"]  # f32
    f["w4"] = p["w4"].astype(jnp.bfloat16)
    f["b4"] = p["b4"]
    f["w5t"] = p["w5"].T.astype(jnp.bfloat16)  # [1, 32]
    f["b5"] = p["b5"]                          # [1, 1]
    return f


def reference_forward_f32(x, p):
    """Pure-JAX f32 reference with explicit (unfolded) eval-mode BatchNorm."""
    h = x
    for i in (1, 2, 3):
        h = h @ p[f"w{i}"] + p[f"b{i}"]
        h = p[f"gamma{i}"] * (h - p[f"mean{i}"]) / jnp.sqrt(p[f"var{i}"] + _BN_EPS) + p[f"beta{i}"]
        h = jnp.maximum(h, 0.0)
    h = jnp.maximum(h @ p["w4"] + p["b4"], 0.0)
    return h @ p["w5"] + p["b5"]


def reference_forward_bf16(x, f):
    """Pure-JAX reference matching the kernel arithmetic (bf16 ops, f32 acc)."""
    h = x.astype(jnp.bfloat16)
    for i in (1, 2, 3, 4):
        h = jnp.dot(h, f[f"w{i}"], preferred_element_type=jnp.float32) + f[f"b{i}"]
        h = jnp.maximum(h.astype(jnp.bfloat16), jnp.bfloat16(0.0))
    return jnp.dot(h, f["w5t"].T, preferred_element_type=jnp.float32) + f["b5"]


if __name__ == "__main__":
    key = jax.random.PRNGKey(0)
    k_x, k_p = jax.random.split(key)

    batch = 8
    input_size = 16
    x = jax.random.normal(k_x, (batch, input_size), jnp.float32)
    params = make_params(k_p, input_size)
    folded = fold_params(params)

    out = jax.block_until_ready(mlp_forward(x, folded))
    assert out.shape == (batch, 1), out.shape

    ref_bf16 = reference_forward_bf16(x, folded)
    ref_f32 = reference_forward_f32(x, params)
    assert jnp.allclose(out, ref_bf16, atol=1e-2, rtol=1e-2), (out, ref_bf16)
    assert jnp.allclose(out, ref_f32, atol=5e-2, rtol=5e-2), (out, ref_f32)

    print("KERNEL_OK")
</pallas_src>

<mosaic_0001>
module attributes {stable_mosaic.version = 11 : i64} {
  func.func @_mlp_kernel(%arg0: i32, %arg1: memref<16x16xf32, #tpu.memory_space<vmem>>, %arg2: memref<16x256xbf16, #tpu.memory_space<vmem>>, %arg3: memref<1x256xf32, #tpu.memory_space<vmem>>, %arg4: memref<256x128xbf16, #tpu.memory_space<vmem>>, %arg5: memref<1x128xf32, #tpu.memory_space<vmem>>, %arg6: memref<128x64xbf16, #tpu.memory_space<vmem>>, %arg7: memref<1x64xf32, #tpu.memory_space<vmem>>, %arg8: memref<64x32xbf16, #tpu.memory_space<vmem>>, %arg9: memref<1x32xf32, #tpu.memory_space<vmem>>, %arg10: memref<1x32xbf16, #tpu.memory_space<vmem>>, %arg11: memref<1x1xf32, #tpu.memory_space<vmem>>, %arg12: memref<1x16xf32, #tpu.memory_space<vmem>>) attributes {dimension_semantics = [#tpu.dimension_semantics<parallel>], iteration_bounds = array<i64: 1>, scalar_prefetch = 0 : i64, scratch_operands = 0 : i64, tpu.core_type = #tpu.core_type<tc>, window_params = [{transform_indices = @transform_0, window_bounds = array<i64: 16, 16>}, {pipeline_mode = #tpu.pipeline_mode<synchronous>, transform_indices = @transform_1, window_bounds = array<i64: 16, 256>}, {pipeline_mode = #tpu.pipeline_mode<synchronous>, transform_indices = @transform_2, window_bounds = array<i64: 1, 256>}, {pipeline_mode = #tpu.pipeline_mode<synchronous>, transform_indices = @transform_3, window_bounds = array<i64: 256, 128>}, {pipeline_mode = #tpu.pipeline_mode<synchronous>, transform_indices = @transform_4, window_bounds = array<i64: 1, 128>}, {pipeline_mode = #tpu.pipeline_mode<synchronous>, transform_indices = @transform_5, window_bounds = array<i64: 128, 64>}, {pipeline_mode = #tpu.pipeline_mode<synchronous>, transform_indices = @transform_6, window_bounds = array<i64: 1, 64>}, {pipeline_mode = #tpu.pipeline_mode<synchronous>, transform_indices = @transform_7, window_bounds = array<i64: 64, 32>}, {pipeline_mode = #tpu.pipeline_mode<synchronous>, transform_indices = @transform_8, window_bounds = array<i64: 1, 32>}, {pipeline_mode = #tpu.pipeline_mode<synchronous>, transform_indices = @transform_9, window_bounds = array<i64: 1, 32>}, {pipeline_mode = #tpu.pipeline_mode<synchronous>, transform_indices = @transform_10, window_bounds = array<i64: 1, 1>}, {transform_indices = @transform_11, window_bounds = array<i64: 1, 16>}]} {
    %c0 = arith.constant 0 : index
    %c0_0 = arith.constant 0 : index
    %0 = vector.load %arg1[%c0, %c0_0] : memref<16x16xf32, #tpu.memory_space<vmem>>, vector<16x16xf32>
    %1 = arith.truncf %0 : vector<16x16xf32> to vector<16x16xbf16>
    %c0_1 = arith.constant 0 : index
    %c0_2 = arith.constant 0 : index
    %2 = vector.load %arg2[%c0_1, %c0_2] : memref<16x256xbf16, #tpu.memory_space<vmem>>, vector<16x256xbf16>
    %cst = arith.constant dense<0.000000e+00> : vector<16x256xf32>
    %3 = tpu.matmul %1, %2, %cst {dimension_numbers = #tpu.dot_dimension_numbers<[1], [0], [0], [1], [0, 0, 1, 1], [], []>} : vector<16x16xbf16>, vector<16x256xbf16>, vector<16x256xf32> -> vector<16x256xf32>
    %c0_3 = arith.constant 0 : index
    %c0_4 = arith.constant 0 : index
    %4 = vector.load %arg3[%c0_3, %c0_4] : memref<1x256xf32, #tpu.memory_space<vmem>>, vector<1x256xf32>
    %5 = vector.broadcast %4 : vector<1x256xf32> to vector<16x256xf32>
    %6 = arith.addf %3, %5 : vector<16x256xf32>
    %7 = arith.truncf %6 : vector<16x256xf32> to vector<16x256xbf16>
    %cst_5 = arith.constant 0.000000e+00 : bf16
    %8 = vector.broadcast %cst_5 : bf16 to vector<16x256xbf16>
    %9 = arith.maximumf %7, %8 : vector<16x256xbf16>
    %c0_6 = arith.constant 0 : index
    %c0_7 = arith.constant 0 : index
    %10 = vector.load %arg4[%c0_6, %c0_7] : memref<256x128xbf16, #tpu.memory_space<vmem>>, vector<256x128xbf16>
    %cst_8 = arith.constant dense<0.000000e+00> : vector<16x128xf32>
    %11 = tpu.matmul %9, %10, %cst_8 {dimension_numbers = #tpu.dot_dimension_numbers<[1], [0], [0], [1], [0, 0, 1, 1], [], []>} : vector<16x256xbf16>, vector<256x128xbf16>, vector<16x128xf32> -> vector<16x128xf32>
    %c0_9 = arith.constant 0 : index
    %c0_10 = arith.constant 0 : index
    %12 = vector.load %arg5[%c0_9, %c0_10] : memref<1x128xf32, #tpu.memory_space<vmem>>, vector<1x128xf32>
    %13 = vector.broadcast %12 : vector<1x128xf32> to vector<16x128xf32>
    %14 = arith.addf %11, %13 : vector<16x128xf32>
    %15 = arith.truncf %14 : vector<16x128xf32> to vector<16x128xbf16>
    %cst_11 = arith.constant 0.000000e+00 : bf16
    %16 = vector.broadcast %cst_11 : bf16 to vector<16x128xbf16>
    %17 = arith.maximumf %15, %16 : vector<16x128xbf16>
    %c0_12 = arith.constant 0 : index
    %c0_13 = arith.constant 0 : index
    %18 = vector.load %arg6[%c0_12, %c0_13] : memref<128x64xbf16, #tpu.memory_space<vmem>>, vector<128x64xbf16>
    %cst_14 = arith.constant dense<0.000000e+00> : vector<16x64xf32>
    %19 = tpu.matmul %17, %18, %cst_14 {dimension_numbers = #tpu.dot_dimension_numbers<[1], [0], [0], [1], [0, 0, 1, 1], [], []>} : vector<16x128xbf16>, vector<128x64xbf16>, vector<16x64xf32> -> vector<16x64xf32>
    %c0_15 = arith.constant 0 : index
    %c0_16 = arith.constant 0 : index
    %20 = vector.load %arg7[%c0_15, %c0_16] : memref<1x64xf32, #tpu.memory_space<vmem>>, vector<1x64xf32>
    %21 = vector.broadcast %20 : vector<1x64xf32> to vector<16x64xf32>
    %22 = arith.addf %19, %21 : vector<16x64xf32>
    %23 = arith.truncf %22 : vector<16x64xf32> to vector<16x64xbf16>
    %cst_17 = arith.constant 0.000000e+00 : bf16
    %24 = vector.broadcast %cst_17 : bf16 to vector<16x64xbf16>
    %25 = arith.maximumf %23, %24 : vector<16x64xbf16>
    %c0_18 = arith.constant 0 : index
    %c0_19 = arith.constant 0 : index
    %26 = vector.load %arg8[%c0_18, %c0_19] : memref<64x32xbf16, #tpu.memory_space<vmem>>, vector<64x32xbf16>
    %cst_20 = arith.constant dense<0.000000e+00> : vector<16x32xf32>
    %27 = tpu.matmul %25, %26, %cst_20 {dimension_numbers = #tpu.dot_dimension_numbers<[1], [0], [0], [1], [0, 0, 1, 1], [], []>} : vector<16x64xbf16>, vector<64x32xbf16>, vector<16x32xf32> -> vector<16x32xf32>
    %c0_21 = arith.constant 0 : index
    %c0_22 = arith.constant 0 : index
    %28 = vector.load %arg9[%c0_21, %c0_22] : memref<1x32xf32, #tpu.memory_space<vmem>>, vector<1x32xf32>
    %29 = vector.broadcast %28 : vector<1x32xf32> to vector<16x32xf32>
    %30 = arith.addf %27, %29 : vector<16x32xf32>
    %31 = arith.truncf %30 : vector<16x32xf32> to vector<16x32xbf16>
    %cst_23 = arith.constant 0.000000e+00 : bf16
    %32 = vector.broadcast %cst_23 : bf16 to vector<16x32xbf16>
    %33 = arith.maximumf %31, %32 : vector<16x32xbf16>
    %c0_24 = arith.constant 0 : index
    %c0_25 = arith.constant 0 : index
    %34 = vector.load %arg10[%c0_24, %c0_25] : memref<1x32xbf16, #tpu.memory_space<vmem>>, vector<1x32xbf16>
    %cst_26 = arith.constant dense<0.000000e+00> : vector<1x16xf32>
    %35 = tpu.matmul %34, %33, %cst_26 {dimension_numbers = #tpu.dot_dimension_numbers<[1], [1], [0], [0], [0, 0, 1, 0], [], []>} : vector<1x32xbf16>, vector<16x32xbf16>, vector<1x16xf32> -> vector<1x16xf32>
    %c0_27 = arith.constant 0 : index
    %c0_28 = arith.constant 0 : index
    %36 = vector.load %arg11[%c0_27, %c0_28] : memref<1x1xf32, #tpu.memory_space<vmem>>, vector<1x1xf32>
    %37 = vector.broadcast %36 : vector<1x1xf32> to vector<1x16xf32>
    %38 = arith.addf %35, %37 : vector<1x16xf32>
    %c0_29 = arith.constant 0 : index
    %c0_30 = arith.constant 0 : index
    %39 = vector.load %arg12[%c0_29, %c0_30] : memref<1x16xf32, #tpu.memory_space<vmem>>, vector<1x16xf32>
    tpu.vector_store %arg12[%c0_29, %c0_30], %38 {strides = array<i32>} : memref<1x16xf32, #tpu.memory_space<vmem>>, vector<1x16xf32>,
    return
  }
  func.func @transform_0(%arg0: i32) -> (i32, i32) {
    %c0_i32 = arith.constant 0 : i32
    %c0_i32_0 = arith.constant 0 : i32
    return %arg0, %c0_i32 : i32, i32
  }
  func.func @transform_1(%arg0: i32) -> (i32, i32) {
    %c0_i32 = arith.constant 0 : i32
    %c0_i32_0 = arith.constant 0 : i32
    %c0_i32_1 = arith.constant 0 : i32
    return %c0_i32, %c0_i32_0 : i32, i32
  }
  func.func @transform_2(%arg0: i32) -> (i32, i32) {
    %c0_i32 = arith.constant 0 : i32
    %c0_i32_0 = arith.constant 0 : i32
    %c0_i32_1 = arith.constant 0 : i32
    return %c0_i32, %c0_i32_0 : i32, i32
  }
  func.func @transform_3(%arg0: i32) -> (i32, i32) {
    %c0_i32 = arith.constant 0 : i32
    %c0_i32_0 = arith.constant 0 : i32
    %c0_i32_1 = arith.constant 0 : i32
    return %c0_i32, %c0_i32_0 : i32, i32
  }
  func.func @transform_4(%arg0: i32) -> (i32, i32) {
    %c0_i32 = arith.constant 0 : i32
    %c0_i32_0 = arith.constant 0 : i32
    %c0_i32_1 = arith.constant 0 : i32
    return %c0_i32, %c0_i32_0 : i32, i32
  }
  func.func @transform_5(%arg0: i32) -> (i32, i32) {
    %c0_i32 = arith.constant 0 : i32
    %c0_i32_0 = arith.constant 0 : i32
    %c0_i32_1 = arith.constant 0 : i32
    return %c0_i32, %c0_i32_0 : i32, i32
  }
  func.func @transform_6(%arg0: i32) -> (i32, i32) {
    %c0_i32 = arith.constant 0 : i32
    %c0_i32_0 = arith.constant 0 : i32
    %c0_i32_1 = arith.constant 0 : i32
    return %c0_i32, %c0_i32_0 : i32, i32
  }
  func.func @transform_7(%arg0: i32) -> (i32, i32) {
    %c0_i32 = arith.constant 0 : i32
    %c0_i32_0 = arith.constant 0 : i32
    %c0_i32_1 = arith.constant 0 : i32
    return %c0_i32, %c0_i32_0 : i32, i32
  }
  func.func @transform_8(%arg0: i32) -> (i32, i32) {
    %c0_i32 = arith.constant 0 : i32
    %c0_i32_0 = arith.constant 0 : i32
    %c0_i32_1 = arith.constant 0 : i32
    return %c0_i32, %c0_i32_0 : i32, i32
  }
  func.func @transform_9(%arg0: i32) -> (i32, i32) {
    %c0_i32 = arith.constant 0 : i32
    %c0_i32_0 = arith.constant 0 : i32
    %c0_i32_1 = arith.constant 0 : i32
    return %c0_i32, %c0_i32_0 : i32, i32
  }
  func.func @transform_10(%arg0: i32) -> (i32, i32) {
    %c0_i32 = arith.constant 0 : i32
    %c0_i32_0 = arith.constant 0 : i32
    %c0_i32_1 = arith.constant 0 : i32
    return %c0_i32, %c0_i32_0 : i32, i32
  }
  func.func @transform_11(%arg0: i32) -> (i32, i32) {
    %c0_i32 = arith.constant 0 : i32
    %c0_i32_0 = arith.constant 0 : i32
    return %c0_i32, %arg0 : i32, i32
  }
}

</mosaic_0001>

<llo_original>
// kernel: tpu_custom_call.1
$region0: #{tpu_custom_call.1}
  #allocation0 [shape = 'u32[]', space=smem, size = 0x4, offset = 0x4, fixed_abs, tag = 'smem constant byte address 0x4 - core index']
  #allocation1 [shape = 'u32[144,128]{1,0:T(1,128)}', space=vmem, size = 0x12000, scoped, tag = 'internal scratch']
  #allocation2 [shape = 'f32[1,1]{1,0:T(1,128)S(1)}', space=vmem, size = 0x200, scoped, tag = 'scoped memory for tpu_custom_call.1']
  %s0 = inlined_call_operand.hbm [shape: f32[16,16], index: 0, kind: input, shape index: {}]
  %s1 = inlined_call_operand.hbm [shape: bf16[16,256], index: 1, kind: input, shape index: {}]
  %s2 = inlined_call_operand.vmem [shape: f32[1,256], index: 2, kind: input, shape index: {}]
  %s3 = inlined_call_operand.vmem [shape: bf16[256,128], index: 3, kind: input, shape index: {}]
  %s4 = inlined_call_operand.hbm [shape: f32[1,128], index: 4, kind: input, shape index: {}]
  %s5 = inlined_call_operand.vmem [shape: bf16[128,64], index: 5, kind: input, shape index: {}]
  %s6 = inlined_call_operand.vmem [shape: f32[1,64], index: 6, kind: input, shape index: {}]
  %s7 = inlined_call_operand.vmem [shape: bf16[64,32], index: 7, kind: input, shape index: {}]
  %s8 = inlined_call_operand.vmem [shape: f32[1,32], index: 8, kind: input, shape index: {}]
  %s9 = inlined_call_operand.vmem [shape: bf16[1,32], index: 9, kind: input, shape index: {}]
  %s10 = inlined_call_operand.<no memory space> [shape: f32[1,1], index: 10, kind: input, shape index: {}]
  %s11 = inlined_call_operand.hbm [shape: f32[1,16], index: 11, kind: output, shape index: {}]
  %s12 = sld [smem:[#allocation0]]
  $region66: #{tpu_custom_call.1} parent=0
    _
  %s14 = ssub.s32 1, %s12
  %s15 = scalar_select 0, %s14, %s12
  %v16 = vstv %s10
  %17 = vst [vmem:[#allocation2] sm:$0x1] %v16
  $region1: #{tpu_custom_call.1} parent=0
    #allocation3 [shape = 'u8[8192]{0}', space=vmem, size = 0x2000, scoped, tag = 'input window, operand 0, single buffered']
    #allocation4 [shape = 's32[1]{0}', space=sflag, size = 0x4, scoped, tag = 'scoped memory for tpu_custom_call.1']
    #allocation5 [shape = 's32[1]{0}', space=sflag, size = 0x4, scoped, tag = 'scoped memory for tpu_custom_call.1']
    #allocation6 [shape = 'u8[8192]{0}', space=vmem, size = 0x2000, scoped, tag = 'input window, operand 1, single buffered']
    #allocation7 [shape = 's32[1]{0}', space=sflag, size = 0x4, scoped, tag = 'scoped memory for tpu_custom_call.1']
    #allocation8 [shape = 'u8[512]{0}', space=vmem, size = 0x400, scoped, tag = 'input window, operand 4, single buffered']
    #allocation9 [shape = 'u8[512]{0}', space=vmem, size = 0x400, scoped, tag = 'output window, operand 0, single buffered']
    %18 = vsyncpa [#allocation4], 0
    %19 = vsyncpa [#allocation7], 0
    %20 = vsyncpa [#allocation5], 0
    // Predicated region
    $region2: #{tpu_custom_call.1} parent=1 // pred_check
      _
    $region3: #{tpu_custom_call.1} parent=1 // pred_check_branch
      %22 = sbr.rel (0) target = $region5
    $region4: #{tpu_custom_call.1} parent=1 // pred_region
      %s24 = ssub.s32 256, 256
      %25 = vsyncadd [#allocation4], %s24
      %s26 = sshll.u32 [#allocation3], 4
      %s27 = int_to_ptr.vmem [resolvable:$true] %s26
      %32 = dma.hbm_to_vmem [thread:$0]  %s0, 256, %s27, [#allocation4], 128, 128, 8
    $region5: #{tpu_custom_call.1} parent=1 // pred_fallthru
      _
    // Predicated region
    $region6: #{tpu_custom_call.1} parent=1 // pred_check
      _
    $region7: #{tpu_custom_call.1} parent=1 // pred_check_branch
      %34 = sbr.rel (0) target = $region9
    $region8: #{tpu_custom_call.1} parent=1 // pred_region
      %s36 = ssub.s32 256, 256
      %37 = vsyncadd [#allocation7], %s36
      %s38 = sshll.u32 [#allocation6], 4
      %s39 = int_to_ptr.vmem [resolvable:$true] %s38
      %44 = dma.hbm_to_vmem [thread:$0]  %s1, 256, %s39, [#allocation7], 128, 128, 8
    $region9: #{tpu_custom_call.1} parent=1 // pred_fallthru
      _
    // Predicated region
    $region10: #{tpu_custom_call.1} parent=1 // pred_check
      _
    $region11: #{tpu_custom_call.1} parent=1 // pred_check_branch
      %46 = sbr.rel (0) target = $region13
    $region12: #{tpu_custom_call.1} parent=1 // pred_region
      _
    $region13: #{tpu_custom_call.1} parent=1 // pred_fallthru
      _
    // Predicated region
    $region14: #{tpu_custom_call.1} parent=1 // pred_check
      _
    $region15: #{tpu_custom_call.1} parent=1 // pred_check_branch
      %48 = sbr.rel (0) target = $region17
    $region16: #{tpu_custom_call.1} parent=1 // pred_region
      _
    $region17: #{tpu_custom_call.1} parent=1 // pred_fallthru
      _
    // Predicated region
    $region18: #{tpu_custom_call.1} parent=1 // pred_check
      _
    $region19: #{tpu_custom_call.1} parent=1 // pred_check_branch
      %50 = sbr.rel (0) target = $region21
    $region20: #{tpu_custom_call.1} parent=1 // pred_region
      %s52 = ssub.s32 16, 16
      %53 = vsyncadd [#allocation7], %s52
      %s55 = sshll.u32 [#allocation8], 4
      %s56 = int_to_ptr.vmem [resolvable:$true] %s55
      %58 = dma.hbm_to_vmem [thread:$0]  %s4, 16, %s56, [#allocation7]
    $region21: #{tpu_custom_call.1} parent=1 // pred_fallthru
      _
    // Predicated region
    $region22: #{tpu_custom_call.1} parent=1 // pred_check
      _
    $region23: #{tpu_custom_call.1} parent=1 // pred_check_branch
      %60 = sbr.rel (0) target = $region25
    $region24: #{tpu_custom_call.1} parent=1 // pred_region
      _
    $region25: #{tpu_custom_call.1} parent=1 // pred_fallthru
      _
    // Predicated region
    $region26: #{tpu_custom_call.1} parent=1 // pred_check
      _
    $region27: #{tpu_custom_call.1} parent=1 // pred_check_branch
      %62 = sbr.rel (0) target = $region29
    $region28: #{tpu_custom_call.1} parent=1 // pred_region
      _
    $region29: #{tpu_custom_call.1} parent=1 // pred_fallthru
      _
    // Predicated region
    $region30: #{tpu_custom_call.1} parent=1 // pred_check
      _
    $region31: #{tpu_custom_call.1} parent=1 // pred_check_branch
      %64 = sbr.rel (0) target = $region33
    $region32: #{tpu_custom_call.1} parent=1 // pred_region
      _
    $region33: #{tpu_custom_call.1} parent=1 // pred_fallthru
      _
    // Predicated region
    $region34: #{tpu_custom_call.1} parent=1 // pred_check
      _
    $region35: #{tpu_custom_call.1} parent=1 // pred_check_branch
      %66 = sbr.rel (0) target = $region37
    $region36: #{tpu_custom_call.1} parent=1 // pred_region
      _
    $region37: #{tpu_custom_call.1} parent=1 // pred_fallthru
      _
    // Predicated region
    $region38: #{tpu_custom_call.1} parent=1 // pred_check
      _
    $region39: #{tpu_custom_call.1} parent=1 // pred_check_branch
      %68 = sbr.rel (0) target = $region41
    $region40: #{tpu_custom_call.1} parent=1 // pred_region
      _
    $region41: #{tpu_custom_call.1} parent=1 // pred_fallthru
      _
    // Predicated region
    $region42: #{tpu_custom_call.1} parent=1 // pred_check
      _
    $region43: #{tpu_custom_call.1} parent=1 // pred_check_branch
      %70 = sbr.rel (0) target = $region45
    $region44: #{tpu_custom_call.1} parent=1 // pred_region
      _
    $region45: #{tpu_custom_call.1} parent=1 // pred_fallthru
      _
    // Predicated region
    $region46: #{tpu_custom_call.1} parent=1 // pred_check
      _
    $region47: #{tpu_custom_call.1} parent=1 // pred_check_branch
      %72 = sbr.rel (0) target = $region49
    $region48: #{tpu_custom_call.1} parent=1 // pred_region
      %73 = dma.done [#allocation4], 256
    $region49: #{tpu_custom_call.1} parent=1 // pred_fallthru
      _
    // Predicated region
    $region50: #{tpu_custom_call.1} parent=1 // pred_check
      _
    $region51: #{tpu_custom_call.1} parent=1 // pred_check_branch
      %75 = sbr.rel (0) target = $region53
    $region52: #{tpu_custom_call.1} parent=1 // pred_region
      %76 = dma.done [#allocation7], 256
    $region53: #{tpu_custom_call.1} parent=1 // pred_fallthru
      _
    // Predicated region
    $region54: #{tpu_custom_call.1} parent=1 // pred_check
      _
    $region55: #{tpu_custom_call.1} parent=1 // pred_check_branch
      %78 = sbr.rel (0) target = $region57
    $region56: #{tpu_custom_call.1} parent=1 // pred_region
      %79 = dma.done [#allocation7], 16
    $region57: #{tpu_custom_call.1} parent=1 // pred_fallthru
      _
    %v81 = vld [vmem:[#allocation3] sm:$0xff]
    %v82 = vld [vmem:[#allocation3 + $0x8] sm:$0xff]
    %v83 = vpack.c.bf16 %v82, %v81
    %v84 = vld [vmem:[#allocation6] sm:$0xff]
    %v85 = vld [vmem:[#allocation6 + $0x8] sm:$0xff]
    %v86 = vld [vmem:[%s2] sm:$0x3]
    %v88 = vlaneseq
    %v89 = vshrl.u32 %v88, 7
    %v90 = vsub.s32 0, %v89
    %v91 = vrot.slane %v86, %v90
    %v92 = vlaneseq
    %v93 = vshrl.u32 %v92, 7
    %v94 = vsub.s32 1, %v93
    %v95 = vrot.slane %v86, %v94
    %v100 = vunpack.c.l.b16 %v84
    %v101 = vunpack.c.h.b16 %v84
    %v102 = vunpack.c.l.b16 %v85
    %v103 = vunpack.c.h.b16 %v85
    %v104 = vpack.c.b16 %v102, %v100
    %v105 = vpack.c.b16 %v103, %v101
    %vm108 = vcmask 130048
    %v110 = vsel %vm108, %v83, 0
    %112 = vmatprep.subr.bf16.mxu0 %v105
    %113 = vmatpush1.bf16.msra.mxu0 %v104
    %114 = vmatprep.subr.bf16.mxu0 0
    %115 = vmatpush1.bf16.msra.mxu0 0
    %116 = vmatprep.subr.bf16.mxu0 0
    %117 = vmatpush1.bf16.msra.mxu0 0
    %118 = vmatprep.subr.bf16.mxu0 0
    %119 = vmatpush1.bf16.msra.mxu0 0
    %120 = vmatprep.subr.bf16.mxu0 0
    %121 = vmatpush1.bf16.msra.mxu0 0
    %122 = vmatprep.subr.bf16.mxu0 0
    %123 = vmatpush1.bf16.msra.mxu0 0
    %124 = vmatprep.subr.bf16.mxu0 0
    %125 = vmatpush1.bf16.msra.mxu0 0
    %126 = vmatprep.subr.bf16.mxu0 0
    %127 = vmatpush1.bf16.msra.mxu0 0
    %128 = vmatprep.subr.bf16.mxu0 0
    %129 = vmatpush1.bf16.msra.mxu0 0
    %130 = vmatprep.subr.bf16.mxu0 0
    %131 = vmatpush1.bf16.msra.mxu0 0
    %132 = vmatprep.subr.bf16.mxu0 0
    %133 = vmatpush1.bf16.msra.mxu0 0
    %134 = vmatprep.subr.bf16.mxu0 0
    %135 = vmatpush1.bf16.msra.mxu0 0
    %136 = vmatprep.subr.bf16.mxu0 0
    %137 = vmatpush1.bf16.msra.mxu0 0
    %138 = vmatprep.subr.bf16.mxu0 0
    %139 = vmatpush1.bf16.msra.mxu0 0
    %140 = vmatprep.subr.bf16.mxu0 0
    %141 = vmatpush1.bf16.msra.mxu0 0
    %142 = vmatprep.subr.bf16.mxu0 0
    %143 = vmatpush1.bf16.msra.mxu0 0
    %144 = vmatprep.mubr.bf16.mxu0 0
    %145 = vmatmul.mubr.bf16.gmra.mrb[0].mxu0 %v110
    %v146 = vpop.f32.mrb[0].mxu0
    %v147 = vadd.f32 %v91, %v146
    %v148 = vpop.f32.mrb[0].mxu0
    %v149 = vadd.f32 %v95, %v148
    %v150 = vpop.f32.mrb[0].mxu0
    %v151 = vadd.f32 %v91, %v150
    %v152 = vpop.f32.mrb[0].mxu0
    %v153 = vadd.f32 %v95, %v152
    %154 = vdwg.mxu0
    %v155 = vpack.c.bf16 %v151, %v147
    %v156 = vpack.c.bf16 %v153, %v149
    %v157 = vmax.bf16 %v155, 0
    %v158 = vmax.bf16 %v156, 0
    %v159 = vld [vmem:[%s3] sm:$0xf]
    %v160 = vld [vmem:[%s3 + $0x4] sm:$0xf]
    %v161 = vld [vmem:[%s3 + $0x8] sm:$0xf]
    %v162 = vld [vmem:[%s3 + $0xc] sm:$0xf]
    %v163 = vld [vmem:[%s3 + $0x10] sm:$0xf]
    %v164 = vld [vmem:[%s3 + $0x14] sm:$0xf]
    %v165 = vld [vmem:[%s3 + $0x18] sm:$0xf]
    %v166 = vld [vmem:[%s3 + $0x1c] sm:$0xf]
    %v167 = vld [vmem:[%s3 + $0x20] sm:$0xf]
    %v168 = vld [vmem:[%s3 + $0x24] sm:$0xf]
    %v169 = vld [vmem:[%s3 + $0x28] sm:$0xf]
    %v170 = vld [vmem:[%s3 + $0x2c] sm:$0xf]
    %v171 = vld [vmem:[%s3 + $0x30] sm:$0xf]
    %v172 = vld [vmem:[%s3 + $0x34] sm:$0xf]
    %v173 = vld [vmem:[%s3 + $0x38] sm:$0xf]
    %v174 = vld [vmem:[%s3 + $0x3c] sm:$0xf]
    %v175 = vld [vmem:[%s3 + $0x40] sm:$0xf]
    %v176 = vld [vmem:[%s3 + $0x44] sm:$0xf]
    %v177 = vld [vmem:[%s3 + $0x48] sm:$0xf]
    %v178 = vld [vmem:[%s3 + $0x4c] sm:$0xf]
    %v179 = vld [vmem:[%s3 + $0x50] sm:$0xf]
    %v180 = vld [vmem:[%s3 + $0x54] sm:$0xf]
    %v181 = vld [vmem:[%s3 + $0x58] sm:$0xf]
    %v182 = vld [vmem:[%s3 + $0x5c] sm:$0xf]
    %v183 = vld [vmem:[%s3 + $0x60] sm:$0xf]
    %v184 = vld [vmem:[%s3 + $0x64] sm:$0xf]
    %v185 = vld [vmem:[%s3 + $0x68] sm:$0xf]
    %v186 = vld [vmem:[%s3 + $0x6c] sm:$0xf]
    %v187 = vld [vmem:[%s3 + $0x70] sm:$0xf]
    %v188 = vld [vmem:[%s3 + $0x74] sm:$0xf]
    %v189 = vld [vmem:[%s3 + $0x78] sm:$0xf]
    %v190 = vld [vmem:[%s3 + $0x7c] sm:$0xf]
    %v191 = vld [vmem:[#allocation8] sm:$0x1]
    %v193 = vlaneseq
    %v194 = vshrl.u32 %v193, 7
    %v195 = vsub.s32 0, %v194
    %v196 = vrot.slane %v191, %v195
    %v230 = vunpack.c.l.b16 %v159
    %v231 = vunpack.c.l.b16 %v160
    %v232 = vunpack.c.l.b16 %v161
    %v233 = vunpack.c.l.b16 %v162
    %v234 = vunpack.c.l.b16 %v163
    %v235 = vunpack.c.l.b16 %v164
    %v236 = vunpack.c.l.b16 %v165
    %v237 = vunpack.c.l.b16 %v166
    %v238 = vunpack.c.l.b16 %v167
    %v239 = vunpack.c.l.b16 %v168
    %v240 = vunpack.c.l.b16 %v169
    %v241 = vunpack.c.l.b16 %v170
    %v242 = vunpack.c.l.b16 %v171
    %v243 = vunpack.c.l.b16 %v172
    %v244 = vunpack.c.l.b16 %v173
    %v245 = vunpack.c.l.b16 %v174
    %v246 = vunpack.c.l.b16 %v175
    %v247 = vunpack.c.l.b16 %v176
    %v248 = vunpack.c.l.b16 %v177
    %v249 = vunpack.c.l.b16 %v178
    %v250 = vunpack.c.l.b16 %v179
    %v251 = vunpack.c.l.b16 %v180
    %v252 = vunpack.c.l.b16 %v181
    %v253 = vunpack.c.l.b16 %v182
    %v254 = vunpack.c.l.b16 %v183
    %v255 = vunpack.c.l.b16 %v184
    %v256 = vunpack.c.l.b16 %v185
    %v257 = vunpack.c.l.b16 %v186
    %v258 = vunpack.c.l.b16 %v187
    %v259 = vunpack.c.l.b16 %v188
    %v260 = vunpack.c.l.b16 %v189
    %v261 = vunpack.c.l.b16 %v190
    %v262 = vpack.c.b16 %v231, %v230
    %v263 = vpack.c.b16 %v233, %v232
    %v264 = vpack.c.b16 %v235, %v234
    %v265 = vpack.c.b16 %v237, %v236
    %v266 = vpack.c.b16 %v239, %v238
    %v267 = vpack.c.b16 %v241, %v240
    %v268 = vpack.c.b16 %v243, %v242
    %v269 = vpack.c.b16 %v245, %v244
    %v270 = vpack.c.b16 %v247, %v246
    %v271 = vpack.c.b16 %v249, %v248
    %v272 = vpack.c.b16 %v251, %v250
    %v273 = vpack.c.b16 %v253, %v252
    %v274 = vpack.c.b16 %v255, %v254
    %v275 = vpack.c.b16 %v257, %v256
    %v276 = vpack.c.b16 %v259, %v258
    %v277 = vpack.c.b16 %v261, %v260
    %294 = vmatprep.subr.bf16.mxu0 0
    %295 = vmatpush1.bf16.msra.mxu0 %v262
    %296 = vmatprep.subr.bf16.mxu0 0
    %297 = vmatpush1.bf16.msra.mxu0 %v263
    %298 = vmatprep.subr.bf16.mxu0 0
    %299 = vmatpush1.bf16.msra.mxu0 %v264
    %300 = vmatprep.subr.bf16.mxu0 0
    %301 = vmatpush1.bf16.msra.mxu0 %v265
    %302 = vmatprep.subr.bf16.mxu0 0
    %303 = vmatpush1.bf16.msra.mxu0 %v266
    %304 = vmatprep.subr.bf16.mxu0 0
    %305 = vmatpush1.bf16.msra.mxu0 %v267
    %306 = vmatprep.subr.bf16.mxu0 0
    %307 = vmatpush1.bf16.msra.mxu0 %v268
    %308 = vmatprep.subr.bf16.mxu0 0
    %309 = vmatpush1.bf16.msra.mxu0 %v269
    %310 = vmatprep.subr.bf16.mxu0 0
    %311 = vmatpush1.bf16.msra.mxu0 %v270
    %312 = vmatprep.subr.bf16.mxu0 0
    %313 = vmatpush1.bf16.msra.mxu0 %v271
    %314 = vmatprep.subr.bf16.mxu0 0
    %315 = vmatpush1.bf16.msra.mxu0 %v272
    %316 = vmatprep.subr.bf16.mxu0 0
    %317 = vmatpush1.bf16.msra.mxu0 %v273
    %318 = vmatprep.subr.bf16.mxu0 0
    %319 = vmatpush1.bf16.msra.mxu0 %v274
    %320 = vmatprep.subr.bf16.mxu0 0
    %321 = vmatpush1.bf16.msra.mxu0 %v275
    %322 = vmatprep.subr.bf16.mxu0 0
    %323 = vmatpush1.bf16.msra.mxu0 %v276
    %324 = vmatprep.subr.bf16.mxu0 0
    %325 = vmatpush1.bf16.msra.mxu0 %v277
    %326 = vmatprep.mubr.bf16.mxu0 %v158
    %327 = vmatmul.mubr.bf16.gmra.mrb[0].mxu0 %v157
    %v328 = vpop.f32.mrb[0].mxu0
    %v329 = vadd.f32 %v196, %v328
    %v330 = vpop.f32.mrb[0].mxu0
    %v331 = vpop.f32.mrb[0].mxu0
    %v332 = vadd.f32 %v196, %v331
    %v333 = vpop.f32.mrb[0].mxu0
    %334 = vdwg.mxu0
    %v335 = vpack.c.bf16 %v332, %v329
    %v336 = vmax.bf16 %v335, 0
    %v337 = vld [vmem:[%s5] sm:$0xf]
    %v338 = vld [vmem:[%s5 + $0x4] sm:$0xf]
    %v339 = vld [vmem:[%s5 + $0x8] sm:$0xf]
    %v340 = vld [vmem:[%s5 + $0xc] sm:$0xf]
    %v341 = vld [vmem:[%s5 + $0x10] sm:$0xf]
    %v342 = vld [vmem:[%s5 + $0x14] sm:$0xf]
    %v343 = vld [vmem:[%s5 + $0x18] sm:$0xf]
    %v344 = vld [vmem:[%s5 + $0x1c] sm:$0xf]
    %v345 = vld [vmem:[%s5 + $0x20] sm:$0xf]
    %v346 = vld [vmem:[%s5 + $0x24] sm:$0xf]
    %v347 = vld [vmem:[%s5 + $0x28] sm:$0xf]
    %v348 = vld [vmem:[%s5 + $0x2c] sm:$0xf]
    %v349 = vld [vmem:[%s5 + $0x30] sm:$0xf]
    %v350 = vld [vmem:[%s5 + $0x34] sm:$0xf]
    %v351 = vld [vmem:[%s5 + $0x38] sm:$0xf]
    %v352 = vld [vmem:[%s5 + $0x3c] sm:$0xf]
    %v353 = vld [vmem:[%s6] sm:$0x1]
    %v355 = vlaneseq
    %v356 = vshrl.u32 %v355, 7
    %v357 = vsub.s32 0, %v356
    %v358 = vrot.slane %v353, %v357
    %v376 = vunpack.c.l.b16 %v337
    %v377 = vunpack.c.l.b16 %v338
    %v378 = vunpack.c.l.b16 %v339
    %v379 = vunpack.c.l.b16 %v340
    %v380 = vunpack.c.l.b16 %v341
    %v381 = vunpack.c.l.b16 %v342
    %v382 = vunpack.c.l.b16 %v343
    %v383 = vunpack.c.l.b16 %v344
    %v384 = vunpack.c.l.b16 %v345
    %v385 = vunpack.c.l.b16 %v346
    %v386 = vunpack.c.l.b16 %v347
    %v387 = vunpack.c.l.b16 %v348
    %v388 = vunpack.c.l.b16 %v349
    %v389 = vunpack.c.l.b16 %v350
    %v390 = vunpack.c.l.b16 %v351
    %v391 = vunpack.c.l.b16 %v352
    %v392 = vpack.c.b16 %v377, %v376
    %v393 = vpack.c.b16 %v379, %v378
    %v394 = vpack.c.b16 %v381, %v380
    %v395 = vpack.c.b16 %v383, %v382
    %v396 = vpack.c.b16 %v385, %v384
    %v397 = vpack.c.b16 %v387, %v386
    %v398 = vpack.c.b16 %v389, %v388
    %v399 = vpack.c.b16 %v391, %v390
    %408 = vmatprep.subr.bf16.mxu0 0
    %409 = vmatpush1.bf16.msra.mxu0 %v392
    %410 = vmatprep.subr.bf16.mxu0 0
    %411 = vmatpush1.bf16.msra.mxu0 %v393
    %412 = vmatprep.subr.bf16.mxu0 0
    %413 = vmatpush1.bf16.msra.mxu0 %v394
    %414 = vmatprep.subr.bf16.mxu0 0
    %415 = vmatpush1.bf16.msra.mxu0 %v395
    %416 = vmatprep.subr.bf16.mxu0 0
    %417 = vmatpush1.bf16.msra.mxu0 %v396
    %418 = vmatprep.subr.bf16.mxu0 0
    %419 = vmatpush1.bf16.msra.mxu0 %v397
    %420 = vmatprep.subr.bf16.mxu0 0
    %421 = vmatpush1.bf16.msra.mxu0 %v398
    %422 = vmatprep.subr.bf16.mxu0 0
    %423 = vmatpush1.bf16.msra.mxu0 %v399
    %424 = vmatprep.subr.bf16.mxu0 0
    %425 = vmatpush1.bf16.msra.mxu0 0
    %426 = vmatprep.subr.bf16.mxu0 0
    %427 = vmatpush1.bf16.msra.mxu0 0
    %428 = vmatprep.subr.bf16.mxu0 0
    %429 = vmatpush1.bf16.msra.mxu0 0
    %430 = vmatprep.subr.bf16.mxu0 0
    %431 = vmatpush1.bf16.msra.mxu0 0
    %432 = vmatprep.subr.bf16.mxu0 0
    %433 = vmatpush1.bf16.msra.mxu0 0
    %434 = vmatprep.subr.bf16.mxu0 0
    %435 = vmatpush1.bf16.msra.mxu0 0
    %436 = vmatprep.subr.bf16.mxu0 0
    %437 = vmatpush1.bf16.msra.mxu0 0
    %438 = vmatprep.subr.bf16.mxu0 0
    %439 = vmatpush1.bf16.msra.mxu0 0
    %440 = vmatprep.mubr.bf16.mxu0 0
    %441 = vmatmul.mubr.bf16.gmra.mrb[0].mxu0 %v336
    %v442 = vpop.f32.mrb[0].mxu0
    %v443 = vadd.f32 %v358, %v442
    %v444 = vpop.f32.mrb[0].mxu0
    %v445 = vpop.f32.mrb[0].mxu0
    %v446 = vadd.f32 %v358, %v445
    %v447 = vpop.f32.mrb[0].mxu0
    %448 = vdwg.mxu0
    %v449 = vpack.c.bf16 %v446, %v443
    %v450 = vmax.bf16 %v449, 0
    %v451 = vld [vmem:[%s7] sm:$0xf]
    %v452 = vld [vmem:[%s7 + $0x4] sm:$0xf]
    %v453 = vld [vmem:[%s7 + $0x8] sm:$0xf]
    %v454 = vld [vmem:[%s7 + $0xc] sm:$0xf]
    %v455 = vld [vmem:[%s7 + $0x10] sm:$0xf]
    %v456 = vld [vmem:[%s7 + $0x14] sm:$0xf]
    %v457 = vld [vmem:[%s7 + $0x18] sm:$0xf]
    %v458 = vld [vmem:[%s7 + $0x1c] sm:$0xf]
    %v459 = vld [vmem:[%s8] sm:$0x1]
    %v461 = vlaneseq
    %v462 = vshrl.u32 %v461, 7
    %v463 = vsub.s32 0, %v462
    %v464 = vrot.slane %v459, %v463
    %v474 = vunpack.c.l.b16 %v451
    %v475 = vunpack.c.l.b16 %v452
    %v476 = vunpack.c.l.b16 %v453
    %v477 = vunpack.c.l.b16 %v454
    %v478 = vunpack.c.l.b16 %v455
    %v479 = vunpack.c.l.b16 %v456
    %v480 = vunpack.c.l.b16 %v457
    %v481 = vunpack.c.l.b16 %v458
    %v482 = vpack.c.b16 %v475, %v474
    %v483 = vpack.c.b16 %v477, %v476
    %v484 = vpack.c.b16 %v479, %v478
    %v485 = vpack.c.b16 %v481, %v480
    %vm490 = vcmask 523264
    %v492 = vsel %vm490, %v450, 0
    %494 = vmatprep.subr.bf16.mxu0 0
    %495 = vmatpush1.bf16.msra.mxu0 %v482
    %496 = vmatprep.subr.bf16.mxu0 0
    %497 = vmatpush1.bf16.msra.mxu0 %v483
    %498 = vmatprep.subr.bf16.mxu0 0
    %499 = vmatpush1.bf16.msra.mxu0 %v484
    %500 = vmatprep.subr.bf16.mxu0 0
    %501 = vmatpush1.bf16.msra.mxu0 %v485
    %502 = vmatprep.subr.bf16.mxu0 0
    %503 = vmatpush1.bf16.msra.mxu0 0
    %504 = vmatprep.subr.bf16.mxu0 0
    %505 = vmatpush1.bf16.msra.mxu0 0
    %506 = vmatprep.subr.bf16.mxu0 0
    %507 = vmatpush1.bf16.msra.mxu0 0
    %508 = vmatprep.subr.bf16.mxu0 0
    %509 = vmatpush1.bf16.msra.mxu0 0
    %510 = vmatprep.subr.bf16.mxu0 0
    %511 = vmatpush1.bf16.msra.mxu0 0
    %512 = vmatprep.subr.bf16.mxu0 0
    %513 = vmatpush1.bf16.msra.mxu0 0
    %514 = vmatprep.subr.bf16.mxu0 0
    %515 = vmatpush1.bf16.msra.mxu0 0
    %516 = vmatprep.subr.bf16.mxu0 0
    %517 = vmatpush1.bf16.msra.mxu0 0
    %518 = vmatprep.subr.bf16.mxu0 0
    %519 = vmatpush1.bf16.msra.mxu0 0
    %520 = vmatprep.subr.bf16.mxu0 0
    %521 = vmatpush1.bf16.msra.mxu0 0
    %522 = vmatprep.subr.bf16.mxu0 0
    %523 = vmatpush1.bf16.msra.mxu0 0
    %524 = vmatprep.subr.bf16.mxu0 0
    %525 = vmatpush1.bf16.msra.mxu0 0
    %526 = vmatprep.mubr.bf16.mxu0 0
    %527 = vmatmul.mubr.bf16.gmra.mrb[0].mxu0 %v492
    %v528 = vpop.f32.mrb[0].mxu0
    %v529 = vadd.f32 %v464, %v528
    %v530 = vpop.f32.mrb[0].mxu0
    %v531 = vpop.f32.mrb[0].mxu0
    %v532 = vadd.f32 %v464, %v531
    %v533 = vpop.f32.mrb[0].mxu0
    %534 = vdwg.mxu0
    %v535 = vpack.c.bf16 %v532, %v529
    %v536 = vmax.bf16 %v535, 0
    %v537 = vld [vmem:[%s9] sm:$0x1]
    %v538 = vld [vmem:[#allocation2] sm:$0x1]
    %540 = vset.pattern.permute.xlu0 0
    %541 = vperm.xlu0 %540, %v538
    %v542 = vpop.permute.xlu0 %541
    %v544 = vlaneseq
    %v545 = vshrl.u32 %v544, 7
    %v546 = vsub.s32 0, %v545
    %v547 = vrot.slane %v542, %v546
    %vm548 = vcmask 261120
    %v550 = vsel %vm548, %v537, 0
    %v553 = vsel %vm548, %v536, 0
    %555 = vmatprep.subr.bf16.mxu0 0
    %556 = vmatpush1.bf16.xpose.msra.mxu0 %v553
    %557 = vmatprep.subr.bf16.mxu0 0
    %558 = vmatpush1.bf16.xpose.msra.mxu0 0
    %559 = vmatprep.subr.bf16.mxu0 0
    %560 = vmatpush1.bf16.xpose.msra.mxu0 0
    %561 = vmatprep.subr.bf16.mxu0 0
    %562 = vmatpush1.bf16.xpose.msra.mxu0 0
    %563 = vmatprep.subr.bf16.mxu0 0
    %564 = vmatpush1.bf16.xpose.msra.mxu0 0
    %565 = vmatprep.subr.bf16.mxu0 0
    %566 = vmatpush1.bf16.xpose.msra.mxu0 0
    %567 = vmatprep.subr.bf16.mxu0 0
    %568 = vmatpush1.bf16.xpose.msra.mxu0 0
    %569 = vmatprep.subr.bf16.mxu0 0
    %570 = vmatpush1.bf16.xpose.msra.mxu0 0
    %571 = vmatprep.subr.bf16.mxu0 0
    %572 = vmatpush1.bf16.xpose.msra.mxu0 0
    %573 = vmatprep.subr.bf16.mxu0 0
    %574 = vmatpush1.bf16.xpose.msra.mxu0 0
    %575 = vmatprep.subr.bf16.mxu0 0
    %576 = vmatpush1.bf16.xpose.msra.mxu0 0
    %577 = vmatprep.subr.bf16.mxu0 0
    %578 = vmatpush1.bf16.xpose.msra.mxu0 0
    %579 = vmatprep.subr.bf16.mxu0 0
    %580 = vmatpush1.bf16.xpose.msra.mxu0 0
    %581 = vmatprep.subr.bf16.mxu0 0
    %582 = vmatpush1.bf16.xpose.msra.mxu0 0
    %583 = vmatprep.subr.bf16.mxu0 0
    %584 = vmatpush1.bf16.xpose.msra.mxu0 0
    %585 = vmatprep.subr.bf16.mxu0 0
    %586 = vmatpush1.bf16.xpose.msra.mxu0 0
    %587 = vmatprep.mubr.bf16.mxu0 0
    %588 = vmatmul.mubr.bf16.gmra.mrb[0].mxu0 %v550
    %v589 = vpop.f32.mrb[0].mxu0
    %v590 = vadd.f32 %v547, %v589
    %v591 = vpop.f32.mrb[0].mxu0
    %v592 = vpop.f32.mrb[0].mxu0
    %v593 = vpop.f32.mrb[0].mxu0
    %594 = vdwg.mxu0
    %vm595 = vcmask 122880
    %596 = vst.msk [vmem:[#allocation9] sm:$0x1] %vm595, %v590
    // Predicated region
    $region58: #{tpu_custom_call.1} parent=1 // pred_check
      _
    $region59: #{tpu_custom_call.1} parent=1 // pred_check_branch
      %598 = sbr.rel (0) target = $region61
    $region60: #{tpu_custom_call.1} parent=1 // pred_region
      %s600 = ssub.s32 16, 16
      %601 = vsyncadd [#allocation5], %s600
      %s603 = sshll.u32 [#allocation9], 4
      %s604 = int_to_ptr.vmem [resolvable:$true] %s603
      %606 = dma.vmem_to_hbm [thread:$0]  %s604, 16, %s11, [#allocation5]
    $region61: #{tpu_custom_call.1} parent=1 // pred_fallthru
      _
    // Predicated region
    $region62: #{tpu_custom_call.1} parent=1 // pred_check
      _
    $region63: #{tpu_custom_call.1} parent=1 // pred_check_branch
      %608 = sbr.rel (0) target = $region65
    $region64: #{tpu_custom_call.1} parent=1 // pred_region
      %609 = dma.done [#allocation5], 16
    $region65: #{tpu_custom_call.1} parent=1 // pred_fallthru
      _
    %610 = vsyncpa [#allocation4], 1
    %611 = vsyncpa [#allocation7], 1
    %612 = vsyncpa [#allocation5], 1

</llo_original>
